<compile_context>
chip_gen: v7x
topology: tpu7x:2x2x1
jax: 0.10.0
libtpu: 0.0.40
codegen_flags: <defaults>
</compile_context>

<pallas_src>
import functools

import jax
import jax.numpy as jnp
from jax.experimental import pallas as pl
from jax.experimental.pallas import tpu as pltpu


_LANE = 128
_MAX_TILE = 1024                       # row-tile cap for the tiled path
_A_SLAB_BYTES = 8 * 1024 * 1024        # per-buffer A_hat slab budget (bf16), v7x-safe
_TILED_VMEM_LIMIT = 32 * 1024 * 1024


def _round_up(x, m):
    return (x + m - 1) // m * m


def _vmem_capacity_bytes():
    try:
        info = pltpu.get_tpu_info()
        cap = getattr(info, "vmem_capacity_bytes", None)
        if cap:
            return int(cap)
    except Exception:
        pass
    return 64 * 1024 * 1024            # conservative (v7x per-TensorCore)


_VMEM_PHYS = _vmem_capacity_bytes()
if _VMEM_PHYS >= 96 * 1024 * 1024:     # v5e / v6e: 128 MiB VMEM per TensorCore
    _FUSE_MAX_N = 6144                 # bf16 A_hat <= 72 MiB stays resident
    _FUSED_VMEM_LIMIT = 112 * 1024 * 1024
else:                                  # v7x (64 MiB / TC) or unknown
    _FUSE_MAX_N = 4096                 # bf16 A_hat <= 32 MiB
    _FUSED_VMEM_LIMIT = 48 * 1024 * 1024


# --------------------------- fused 3-layer kernel ----------------------------

def _gcn_fused_kernel(a_ref, x_ref, w1_ref, b1_ref, w2_ref, b2_ref,
                      w3_ref, b3_ref, out_ref, h_ref, *, agg_first):
    """All three GCNConv layers; A_hat is loaded into VMEM exactly once."""
    a = a_ref[...]                                           # bf16 (Np, Np)

    def layer(v, w_r, b_r, relu, agg):
        w = w_r[...]
        b = b_r[...]
        if agg:     # narrow input features: aggregate first, then transform
            z = jnp.dot(a, v.astype(jnp.bfloat16),
                        preferred_element_type=jnp.float32)
            y = jnp.dot(z.astype(jnp.bfloat16), w.astype(jnp.bfloat16),
                        preferred_element_type=jnp.float32) + b
        else:       # narrow output features: transform first, then aggregate
            t = jnp.dot(v.astype(jnp.bfloat16), w.astype(jnp.bfloat16),
                        preferred_element_type=jnp.float32)
            y = jnp.dot(a, t.astype(jnp.bfloat16),
                        preferred_element_type=jnp.float32) + b
        return jnp.maximum(y, 0.0) if relu else y

    x1 = layer(x_ref[...], w1_ref, b1_ref, True, agg_first[0])
    h = layer(x1, w2_ref, b2_ref, True, agg_first[1])
    out = layer(h, w3_ref, b3_ref, False, agg_first[2])
    h_ref[...] = h.astype(h_ref.dtype)
    out_ref[...] = out.astype(out_ref.dtype)


def _gcn_forward_fused(a_hat, x, params):
    n_pad = a_hat.shape[0]
    f_in = x.shape[1]
    h1 = params["w1"].shape[1]
    h2 = params["w2"].shape[1]
    f_out = params["w3"].shape[1]
    agg_first = (f_in <= h1, h1 <= h2, h2 <= f_out)
    kernel = functools.partial(_gcn_fused_kernel, agg_first=agg_first)

    out, h = pl.pallas_call(
        kernel,
        out_shape=(jax.ShapeDtypeStruct((n_pad, f_out), jnp.float32),
                   jax.ShapeDtypeStruct((n_pad, h2), jnp.float32)),
        in_specs=[
            pl.BlockSpec((n_pad, n_pad), lambda: (0, 0)),
            pl.BlockSpec((n_pad, f_in), lambda: (0, 0)),
            pl.BlockSpec(params["w1"].shape, lambda: (0, 0)),
            pl.BlockSpec(params["b1"].shape, lambda: (0, 0)),
            pl.BlockSpec(params["w2"].shape, lambda: (0, 0)),
            pl.BlockSpec(params["b2"].shape, lambda: (0, 0)),
            pl.BlockSpec(params["w3"].shape, lambda: (0, 0)),
            pl.BlockSpec(params["b3"].shape, lambda: (0, 0)),
        ],
        out_specs=(pl.BlockSpec((n_pad, f_out), lambda: (0, 0)),
                   pl.BlockSpec((n_pad, h2), lambda: (0, 0))),
        compiler_params=pltpu.CompilerParams(vmem_limit_bytes=_FUSED_VMEM_LIMIT),
    )(a_hat, x.astype(jnp.bfloat16), params["w1"], params["b1"],
      params["w2"], params["b2"], params["w3"], params["b3"])
    return out, h


# --------------------------- tiled per-layer kernel ---------------------------

def _gcn_layer_kernel(*refs, apply_relu, post_matmul, k_block):
    """Grid step (i, k): acc[i] += A[i, k-slab] @ V[k-slab]; epilogue at k==last.

    V (the node-feature slab) is fully VMEM-resident; the k-chunk is sliced
    in-kernel with pl.ds.
    """
    if post_matmul:
        a_ref, v_ref, w_ref, b_ref, o_ref, acc_ref = refs
    else:
        a_ref, v_ref, b_ref, o_ref, acc_ref = refs
        w_ref = None

    k = pl.program_id(1)

    @pl.when(k == 0)
    def _():
        acc_ref[...] = jnp.zeros_like(acc_ref)

    off = pl.multiple_of(k * k_block, k_block)
    v_chunk = v_ref[pl.ds(off, k_block), :]
    acc_ref[...] += jnp.dot(a_ref[...], v_chunk,
                            preferred_element_type=jnp.float32)

    @pl.when(k == pl.num_programs(1) - 1)
    def _():
        y = acc_ref[...]
        if post_matmul:
            y = jnp.dot(y.astype(jnp.bfloat16), w_ref[...].astype(jnp.bfloat16),
                        preferred_element_type=jnp.float32)
        y = y + b_ref[...]
        if apply_relu:
            y = jnp.maximum(y, 0.0)
        o_ref[...] = y.astype(o_ref.dtype)


def gcn_layer_tiled(a_hat, x, w, b, *, apply_relu, tile, k_block, out_dtype):
    """One GCNConv layer; A_hat streamed in contiguous (tile, k_block) bf16 slabs."""
    n_pad = a_hat.shape[0]
    f_in, f_out = w.shape
    agg_first = f_in <= f_out          # stream the narrower operand through A_hat

    if agg_first:
        v = x.astype(jnp.bfloat16)                                     # (Np, f_in)
        f_v = f_in
    else:
        # Hoist the tiny dense transform out of the tiled reduction loop.
        v = jnp.dot(x.astype(jnp.float32), w,
                    preferred_element_type=jnp.float32).astype(jnp.bfloat16)
        f_v = f_out

    kernel = functools.partial(_gcn_layer_kernel, apply_relu=apply_relu,
                               post_matmul=agg_first, k_block=k_block)

    in_specs = [
        # A_hat row-slab: contiguous bf16 block, streamed over the grid.
        pl.BlockSpec((tile, k_block), lambda i, k: (i, k)),
        # Node-feature slab: constant block index => fetched once, VMEM-resident.
        pl.BlockSpec((n_pad, f_v), lambda i, k: (0, 0)),
    ]
    operands = [a_hat, v]
    if agg_first:
        in_specs.append(pl.BlockSpec((f_in, f_out), lambda i, k: (0, 0)))  # W resident
        operands.append(w)
    in_specs.append(pl.BlockSpec((1, f_out), lambda i, k: (0, 0)))         # b resident
    operands.append(b)

    return pl.pallas_call(
        kernel,
        out_shape=jax.ShapeDtypeStruct((n_pad, f_out), out_dtype),
        grid=(n_pad // tile, n_pad // k_block),
        in_specs=in_specs,
        out_specs=pl.BlockSpec((tile, f_out), lambda i, k: (i, 0)),
        scratch_shapes=[pltpu.VMEM((tile, f_v), jnp.float32)],
        compiler_params=pltpu.CompilerParams(
            dimension_semantics=("parallel", "arbitrary"),
            vmem_limit_bytes=_TILED_VMEM_LIMIT),
    )(*operands)


# ------------------------------ JAX glue --------------------------------------

def build_normalized_adjacency(edge_index, num_nodes, n_pad):
    """Dense bf16 A_hat = D^{-1/2}(A+I)D^{-1/2} (PyG GCNConv norm), zero-padded."""
    src = edge_index[0]
    dst = edge_index[1]
    loop = jnp.arange(num_nodes, dtype=edge_index.dtype)
    src = jnp.concatenate([src, loop])
    dst = jnp.concatenate([dst, loop])
    a = jnp.zeros((n_pad, n_pad), jnp.float32).at[dst, src].add(1.0)
    deg = a.sum(axis=1)
    dinv_sqrt = jnp.where(deg > 0, 1.0 / jnp.sqrt(deg), 0.0)
    a_hat = dinv_sqrt[:, None] * a * dinv_sqrt[None, :]
    return a_hat.astype(jnp.bfloat16)


def glorot(key, shape):
    fan_in, fan_out = shape
    limit = jnp.sqrt(6.0 / (fan_in + fan_out))
    return jax.random.uniform(key, shape, jnp.float32, -limit, limit)


def init_gcn_params(key, in_channels, hidden_channels, hidden_channels_2,
                    out_channels):
    k1, k2, k3 = jax.random.split(key, 3)
    return {
        "w1": glorot(k1, (in_channels, hidden_channels)),
        "b1": jnp.zeros((1, hidden_channels), jnp.float32),
        "w2": glorot(k2, (hidden_channels, hidden_channels_2)),
        "b2": jnp.zeros((1, hidden_channels_2), jnp.float32),
        "w3": glorot(k3, (hidden_channels_2, out_channels)),
        "b3": jnp.zeros((1, out_channels), jnp.float32),
    }


def _pad_rows(arr, n_pad):
    n = arr.shape[0]
    return arr if n == n_pad else jnp.pad(arr, ((0, n_pad - n), (0, 0)))


def gcn_forward(params, x, edge_index, *, force_tiled=False,
                max_tile=_MAX_TILE, a_slab_bytes=_A_SLAB_BYTES):
    """Mirrors GCN.forward: returns (final_output, hidden_after_relu2)."""
    n = x.shape[0]
    n_min = _round_up(n, _LANE)

    if n_min <= _FUSE_MAX_N and not force_tiled:
        n_pad = n_min
        a_hat = build_normalized_adjacency(edge_index, n, n_pad)
        x_p = _pad_rows(x.astype(jnp.float32), n_pad)
        out, h = _gcn_forward_fused(a_hat, x_p, params)
        return out[:n], h[:n]

    # Tiled path: tile <= n_pad//2 when possible so both v7x TCs get row tiles.
    tile = min(max_tile, _round_up(max(n_min // 2, _LANE), _LANE))
    n_pad = _round_up(n, tile)
    n_tiles = n_pad // tile
    # Widest reduction slab (multiple of tile, dividing n_pad) within budget.
    budget_tiles = max(1, a_slab_bytes // (tile * tile * 2))
    k_mult = 1
    for d in range(1, n_tiles + 1):
        if n_tiles % d == 0 and d <= budget_tiles:
            k_mult = d
    k_block = k_mult * tile

    a_hat = build_normalized_adjacency(edge_index, n, n_pad)
    x_p = _pad_rows(x.astype(jnp.float32), n_pad)

    x1 = gcn_layer_tiled(a_hat, x_p, params["w1"], params["b1"],
                         apply_relu=True, tile=tile, k_block=k_block,
                         out_dtype=jnp.bfloat16)
    h = gcn_layer_tiled(a_hat, x1, params["w2"], params["b2"],
                        apply_relu=True, tile=tile, k_block=k_block,
                        out_dtype=jnp.float32)
    out = gcn_layer_tiled(a_hat, h, params["w3"], params["b3"],
                          apply_relu=False, tile=tile, k_block=k_block,
                          out_dtype=jnp.float32)
    return out[:n], h[:n]


def gcn_forward_ref(params, x, edge_index):
    """Plain-JAX reference (f32 math on the same quantized A_hat)."""
    n = x.shape[0]
    a_hat = build_normalized_adjacency(edge_index, n, n).astype(jnp.float32)

    def layer(v, w, b, relu):
        y = a_hat @ (v @ w) + b
        return jnp.maximum(y, 0.0) if relu else y

    x1 = layer(x, params["w1"], params["b1"], True)
    h = layer(x1, params["w2"], params["b2"], True)
    out = layer(h, params["w3"], params["b3"], False)
    return out, h


# --------------------------------- main ----------------------------------------

if __name__ == "__main__":
    key = jax.random.PRNGKey(0)
    k_x, k_e, k_p, k_x2, k_e2 = jax.random.split(key, 5)

    in_channels, hidden_channels, hidden_channels_2, out_channels = 4, 32, 16, 4
    params = init_gcn_params(k_p, in_channels, hidden_channels,
                             hidden_channels_2, out_channels)

    # --- small demo matching the module (exercises the fused kernel) ---
    num_nodes, num_edges = 8, 16
    x = jax.random.normal(k_x, (num_nodes, in_channels), jnp.float32)
    edge_index = jax.random.randint(k_e, (2, num_edges), 0, num_nodes,
                                    dtype=jnp.int32)

    out, h = gcn_forward(params, x, edge_index)
    jax.block_until_ready((out, h))
    assert out.shape == (num_nodes, out_channels)
    assert h.shape == (num_nodes, hidden_channels_2)
    out_ref, h_ref = gcn_forward_ref(params, x, edge_index)
    assert jnp.allclose(out, out_ref, rtol=5e-2, atol=5e-2)
    assert jnp.allclose(h, h_ref, rtol=5e-2, atol=5e-2)

    # --- larger graph: fused (default), tiled single-slab, tiled multi-k ---
    n2, e2 = 1024, 4096
    x2 = jax.random.normal(k_x2, (n2, in_channels), jnp.float32)
    edge_index2 = jax.random.randint(k_e2, (2, e2), 0, n2, dtype=jnp.int32)
    out2_ref, h2_ref = gcn_forward_ref(params, x2, edge_index2)

    variants = (
        {},                                             # fused
        {"force_tiled": True},                          # tiled, k collapsed (grid 2x1)
        {"force_tiled": True, "max_tile": 256,          # tiled, multi-k accumulation
         "a_slab_bytes": 256 * 256 * 2},                #   (grid 4x4)
    )
    for kwargs in variants:
        out2, h2 = gcn_forward(params, x2, edge_index2, **kwargs)
        jax.block_until_ready((out2, h2))
        assert jnp.allclose(out2, out2_ref, rtol=5e-2, atol=5e-2), kwargs
        assert jnp.allclose(h2, h2_ref, rtol=5e-2, atol=5e-2), kwargs

    print("KERNEL_OK")
</pallas_src>

<mosaic_0001>
module attributes {stable_mosaic.version = 11 : i64} {
  func.func @_gcn_fused_kernel(%arg0: memref<128x128xbf16, #tpu.memory_space<vmem>>, %arg1: memref<128x4xbf16, #tpu.memory_space<vmem>>, %arg2: memref<4x32xf32, #tpu.memory_space<vmem>>, %arg3: memref<1x32xf32, #tpu.memory_space<vmem>>, %arg4: memref<32x16xf32, #tpu.memory_space<vmem>>, %arg5: memref<1x16xf32, #tpu.memory_space<vmem>>, %arg6: memref<16x4xf32, #tpu.memory_space<vmem>>, %arg7: memref<1x4xf32, #tpu.memory_space<vmem>>, %arg8: memref<128x4xf32, #tpu.memory_space<vmem>>, %arg9: memref<128x16xf32, #tpu.memory_space<vmem>>) attributes {dimension_semantics = [], scalar_prefetch = 0 : i64, scratch_operands = 0 : i64, tpu.core_type = #tpu.core_type<tc>} {
    %c0 = arith.constant 0 : index
    %c0_0 = arith.constant 0 : index
    %0 = vector.load %arg0[%c0, %c0_0] : memref<128x128xbf16, #tpu.memory_space<vmem>>, vector<128x128xbf16>
    %c0_1 = arith.constant 0 : index
    %c0_2 = arith.constant 0 : index
    %1 = vector.load %arg1[%c0_1, %c0_2] : memref<128x4xbf16, #tpu.memory_space<vmem>>, vector<128x4xbf16>
    %c0_3 = arith.constant 0 : index
    %c0_4 = arith.constant 0 : index
    %2 = vector.load %arg2[%c0_3, %c0_4] : memref<4x32xf32, #tpu.memory_space<vmem>>, vector<4x32xf32>
    %c0_5 = arith.constant 0 : index
    %c0_6 = arith.constant 0 : index
    %3 = vector.load %arg3[%c0_5, %c0_6] : memref<1x32xf32, #tpu.memory_space<vmem>>, vector<1x32xf32>
    %cst = arith.constant dense<0.000000e+00> : vector<128x4xf32>
    %4 = tpu.matmul %0, %1, %cst {dimension_numbers = #tpu.dot_dimension_numbers<[1], [0], [0], [1], [0, 0, 1, 1], [], []>} : vector<128x128xbf16>, vector<128x4xbf16>, vector<128x4xf32> -> vector<128x4xf32>
    %5 = arith.truncf %4 : vector<128x4xf32> to vector<128x4xbf16>
    %6 = arith.truncf %2 : vector<4x32xf32> to vector<4x32xbf16>
    %cst_7 = arith.constant dense<0.000000e+00> : vector<128x32xf32>
    %7 = tpu.matmul %5, %6, %cst_7 {dimension_numbers = #tpu.dot_dimension_numbers<[1], [0], [0], [1], [0, 0, 1, 1], [], []>} : vector<128x4xbf16>, vector<4x32xbf16>, vector<128x32xf32> -> vector<128x32xf32>
    %8 = vector.broadcast %3 : vector<1x32xf32> to vector<128x32xf32>
    %9 = arith.addf %7, %8 : vector<128x32xf32>
    %cst_8 = arith.constant 0.000000e+00 : f32
    %10 = vector.broadcast %cst_8 : f32 to vector<128x32xf32>
    %11 = arith.maximumf %9, %10 : vector<128x32xf32>
    %c0_9 = arith.constant 0 : index
    %c0_10 = arith.constant 0 : index
    %12 = vector.load %arg4[%c0_9, %c0_10] : memref<32x16xf32, #tpu.memory_space<vmem>>, vector<32x16xf32>
    %c0_11 = arith.constant 0 : index
    %c0_12 = arith.constant 0 : index
    %13 = vector.load %arg5[%c0_11, %c0_12] : memref<1x16xf32, #tpu.memory_space<vmem>>, vector<1x16xf32>
    %14 = arith.truncf %11 : vector<128x32xf32> to vector<128x32xbf16>
    %15 = arith.truncf %12 : vector<32x16xf32> to vector<32x16xbf16>
    %cst_13 = arith.constant dense<0.000000e+00> : vector<128x16xf32>
    %16 = tpu.matmul %14, %15, %cst_13 {dimension_numbers = #tpu.dot_dimension_numbers<[1], [0], [0], [1], [0, 0, 1, 1], [], []>} : vector<128x32xbf16>, vector<32x16xbf16>, vector<128x16xf32> -> vector<128x16xf32>
    %17 = arith.truncf %16 : vector<128x16xf32> to vector<128x16xbf16>
    %cst_14 = arith.constant dense<0.000000e+00> : vector<128x16xf32>
    %18 = tpu.matmul %0, %17, %cst_14 {dimension_numbers = #tpu.dot_dimension_numbers<[1], [0], [0], [1], [0, 0, 1, 1], [], []>} : vector<128x128xbf16>, vector<128x16xbf16>, vector<128x16xf32> -> vector<128x16xf32>
    %19 = vector.broadcast %13 : vector<1x16xf32> to vector<128x16xf32>
    %20 = arith.addf %18, %19 : vector<128x16xf32>
    %cst_15 = arith.constant 0.000000e+00 : f32
    %21 = vector.broadcast %cst_15 : f32 to vector<128x16xf32>
    %22 = arith.maximumf %20, %21 : vector<128x16xf32>
    %c0_16 = arith.constant 0 : index
    %c0_17 = arith.constant 0 : index
    %23 = vector.load %arg6[%c0_16, %c0_17] : memref<16x4xf32, #tpu.memory_space<vmem>>, vector<16x4xf32>
    %c0_18 = arith.constant 0 : index
    %c0_19 = arith.constant 0 : index
    %24 = vector.load %arg7[%c0_18, %c0_19] : memref<1x4xf32, #tpu.memory_space<vmem>>, vector<1x4xf32>
    %25 = arith.truncf %22 : vector<128x16xf32> to vector<128x16xbf16>
    %26 = arith.truncf %23 : vector<16x4xf32> to vector<16x4xbf16>
    %cst_20 = arith.constant dense<0.000000e+00> : vector<128x4xf32>
    %27 = tpu.matmul %25, %26, %cst_20 {dimension_numbers = #tpu.dot_dimension_numbers<[1], [0], [0], [1], [0, 0, 1, 1], [], []>} : vector<128x16xbf16>, vector<16x4xbf16>, vector<128x4xf32> -> vector<128x4xf32>
    %28 = arith.truncf %27 : vector<128x4xf32> to vector<128x4xbf16>
    %cst_21 = arith.constant dense<0.000000e+00> : vector<128x4xf32>
    %29 = tpu.matmul %0, %28, %cst_21 {dimension_numbers = #tpu.dot_dimension_numbers<[1], [0], [0], [1], [0, 0, 1, 1], [], []>} : vector<128x128xbf16>, vector<128x4xbf16>, vector<128x4xf32> -> vector<128x4xf32>
    %30 = vector.broadcast %24 : vector<1x4xf32> to vector<128x4xf32>
    %31 = arith.addf %29, %30 : vector<128x4xf32>
    %c0_22 = arith.constant 0 : index
    %c0_23 = arith.constant 0 : index
    %32 = vector.load %arg9[%c0_22, %c0_23] : memref<128x16xf32, #tpu.memory_space<vmem>>, vector<128x16xf32>
    tpu.vector_store %arg9[%c0_22, %c0_23], %22 {strides = array<i32>} : memref<128x16xf32, #tpu.memory_space<vmem>>, vector<128x16xf32>,
    %c0_24 = arith.constant 0 : index
    %c0_25 = arith.constant 0 : index
    %33 = vector.load %arg8[%c0_24, %c0_25] : memref<128x4xf32, #tpu.memory_space<vmem>>, vector<128x4xf32>
    tpu.vector_store %arg8[%c0_24, %c0_25], %31 {strides = array<i32>} : memref<128x4xf32, #tpu.memory_space<vmem>>, vector<128x4xf32>,
    return
  }
}

</mosaic_0001>

<llo_original>
// kernel: tpu_custom_call.1
$region0: #{tpu_custom_call.1}
  #allocation0 [shape = 'u32[]', space=smem, size = 0x4, offset = 0x4, fixed_abs, tag = 'smem constant byte address 0x4 - core index']
  #allocation1 [shape = 'u32[144,128]{1,0:T(1,128)}', space=vmem, size = 0x12000, scoped, tag = 'internal scratch']
  %s0 = inlined_call_operand.vmem [shape: bf16[128,128], index: 0, kind: input, shape index: {}]
  %s1 = inlined_call_operand.vmem [shape: bf16[128,4], index: 1, kind: input, shape index: {}]
  %s2 = inlined_call_operand.vmem [shape: f32[4,32], index: 2, kind: input, shape index: {}]
  %s3 = inlined_call_operand.vmem [shape: f32[1,32], index: 3, kind: input, shape index: {}]
  %s4 = inlined_call_operand.vmem [shape: f32[32,16], index: 4, kind: input, shape index: {}]
  %s5 = inlined_call_operand.vmem [shape: f32[1,16], index: 5, kind: input, shape index: {}]
  %s6 = inlined_call_operand.vmem [shape: f32[16,4], index: 6, kind: input, shape index: {}]
  %s7 = inlined_call_operand.vmem [shape: f32[1,4], index: 7, kind: input, shape index: {}]
  %s8 = inlined_call_operand.vmem [shape: f32[128,4], index: 8, kind: output, shape index: {0}]
  %s9 = inlined_call_operand.vmem [shape: f32[128,16], index: 9, kind: output, shape index: {1}]
  %10 = xla_tuple %s8, %s9
  %s11 = sld [smem:[#allocation0]]
  $region50: #{tpu_custom_call.1} parent=0
    _
  %s13 = ssub.s32 1, %s11
  %s14 = scalar_select 0, %s13, %s11
  // Predicated region
  $region2: #{tpu_custom_call.1} parent=0 // pred_check
    _
  $region3: #{tpu_custom_call.1} parent=0 // pred_check_branch
    %16 = sbr.rel (0) target = $region5
  $region4: #{tpu_custom_call.1} parent=0 // pred_region
    _
  $region5: #{tpu_custom_call.1} parent=0 // pred_fallthru
    _
  // Predicated region
  $region6: #{tpu_custom_call.1} parent=0 // pred_check
    _
  $region7: #{tpu_custom_call.1} parent=0 // pred_check_branch
    %18 = sbr.rel (0) target = $region9
  $region8: #{tpu_custom_call.1} parent=0 // pred_region
    _
  $region9: #{tpu_custom_call.1} parent=0 // pred_fallthru
    _
  // Predicated region
  $region10: #{tpu_custom_call.1} parent=0 // pred_check
    _
  $region11: #{tpu_custom_call.1} parent=0 // pred_check_branch
    %20 = sbr.rel (0) target = $region13
  $region12: #{tpu_custom_call.1} parent=0 // pred_region
    _
  $region13: #{tpu_custom_call.1} parent=0 // pred_fallthru
    _
  // Predicated region
  $region14: #{tpu_custom_call.1} parent=0 // pred_check
    _
  $region15: #{tpu_custom_call.1} parent=0 // pred_check_branch
    %22 = sbr.rel (0) target = $region17
  $region16: #{tpu_custom_call.1} parent=0 // pred_region
    _
  $region17: #{tpu_custom_call.1} parent=0 // pred_fallthru
    _
  // Predicated region
  $region18: #{tpu_custom_call.1} parent=0 // pred_check
    _
  $region19: #{tpu_custom_call.1} parent=0 // pred_check_branch
    %24 = sbr.rel (0) target = $region21
  $region20: #{tpu_custom_call.1} parent=0 // pred_region
    _
  $region21: #{tpu_custom_call.1} parent=0 // pred_fallthru
    _
  // Predicated region
  $region22: #{tpu_custom_call.1} parent=0 // pred_check
    _
  $region23: #{tpu_custom_call.1} parent=0 // pred_check_branch
    %26 = sbr.rel (0) target = $region25
  $region24: #{tpu_custom_call.1} parent=0 // pred_region
    _
  $region25: #{tpu_custom_call.1} parent=0 // pred_fallthru
    _
  // Predicated region
  $region26: #{tpu_custom_call.1} parent=0 // pred_check
    _
  $region27: #{tpu_custom_call.1} parent=0 // pred_check_branch
    %28 = sbr.rel (0) target = $region29
  $region28: #{tpu_custom_call.1} parent=0 // pred_region
    _
  $region29: #{tpu_custom_call.1} parent=0 // pred_fallthru
    _
  // Predicated region
  $region30: #{tpu_custom_call.1} parent=0 // pred_check
    _
  $region31: #{tpu_custom_call.1} parent=0 // pred_check_branch
    %30 = sbr.rel (0) target = $region33
  $region32: #{tpu_custom_call.1} parent=0 // pred_region
    _
  $region33: #{tpu_custom_call.1} parent=0 // pred_fallthru
    _
  %v32 = vld [vmem:[%s0] sm:$0xf]
  %v33 = vld [vmem:[%s0 + $0x4] sm:$0xf]
  %v34 = vld [vmem:[%s0 + $0x8] sm:$0xf]
  %v35 = vld [vmem:[%s0 + $0xc] sm:$0xf]
  %v36 = vld [vmem:[%s0 + $0x10] sm:$0xf]
  %v37 = vld [vmem:[%s0 + $0x14] sm:$0xf]
  %v38 = vld [vmem:[%s0 + $0x18] sm:$0xf]
  %v39 = vld [vmem:[%s0 + $0x1c] sm:$0xf]
  %v40 = vld [vmem:[%s0 + $0x20] sm:$0xf]
  %v41 = vld [vmem:[%s0 + $0x24] sm:$0xf]
  %v42 = vld [vmem:[%s0 + $0x28] sm:$0xf]
  %v43 = vld [vmem:[%s0 + $0x2c] sm:$0xf]
  %v44 = vld [vmem:[%s0 + $0x30] sm:$0xf]
  %v45 = vld [vmem:[%s0 + $0x34] sm:$0xf]
  %v46 = vld [vmem:[%s0 + $0x38] sm:$0xf]
  %v47 = vld [vmem:[%s0 + $0x3c] sm:$0xf]
  %v48 = vld [vmem:[%s1] sm:$0xf]
  %v49 = vld [vmem:[%s1 + $0x4] sm:$0xf]
  %v50 = vld [vmem:[%s1 + $0x8] sm:$0xf]
  %v51 = vld [vmem:[%s1 + $0xc] sm:$0xf]
  %v52 = vld [vmem:[%s1 + $0x10] sm:$0xf]
  %v53 = vld [vmem:[%s1 + $0x14] sm:$0xf]
  %v54 = vld [vmem:[%s1 + $0x18] sm:$0xf]
  %v55 = vld [vmem:[%s1 + $0x1c] sm:$0xf]
  %v56 = vld [vmem:[%s1 + $0x20] sm:$0xf]
  %v57 = vld [vmem:[%s1 + $0x24] sm:$0xf]
  %v58 = vld [vmem:[%s1 + $0x28] sm:$0xf]
  %v59 = vld [vmem:[%s1 + $0x2c] sm:$0xf]
  %v60 = vld [vmem:[%s1 + $0x30] sm:$0xf]
  %v61 = vld [vmem:[%s1 + $0x34] sm:$0xf]
  %v62 = vld [vmem:[%s1 + $0x38] sm:$0xf]
  %v63 = vld [vmem:[%s1 + $0x3c] sm:$0xf]
  %v64 = vld [vmem:[%s2] sm:$0xf]
  %v65 = vld [vmem:[%s3] sm:$0x1]
  %v82 = vunpack.c.l.b16 %v32
  %v83 = vunpack.c.l.b16 %v33
  %v84 = vunpack.c.l.b16 %v34
  %v85 = vunpack.c.l.b16 %v35
  %v86 = vunpack.c.l.b16 %v36
  %v87 = vunpack.c.l.b16 %v37
  %v88 = vunpack.c.l.b16 %v38
  %v89 = vunpack.c.l.b16 %v39
  %v90 = vunpack.c.l.b16 %v40
  %v91 = vunpack.c.l.b16 %v41
  %v92 = vunpack.c.l.b16 %v42
  %v93 = vunpack.c.l.b16 %v43
  %v94 = vunpack.c.l.b16 %v44
  %v95 = vunpack.c.l.b16 %v45
  %v96 = vunpack.c.l.b16 %v46
  %v97 = vunpack.c.l.b16 %v47
  %v98 = vpack.c.b16 %v83, %v82
  %v99 = vpack.c.b16 %v85, %v84
  %v100 = vpack.c.b16 %v87, %v86
  %v101 = vpack.c.b16 %v89, %v88
  %v102 = vpack.c.b16 %v91, %v90
  %v103 = vpack.c.b16 %v93, %v92
  %v104 = vpack.c.b16 %v95, %v94
  %v105 = vpack.c.b16 %v97, %v96
  %v130 = vunpack.c.l.b16 %v48
  %v131 = vunpack.c.l.b16 %v49
  %v132 = vunpack.c.l.b16 %v50
  %v133 = vunpack.c.l.b16 %v51
  %v134 = vunpack.c.l.b16 %v52
  %v135 = vunpack.c.l.b16 %v53
  %v136 = vunpack.c.l.b16 %v54
  %v137 = vunpack.c.l.b16 %v55
  %v138 = vunpack.c.l.b16 %v56
  %v139 = vunpack.c.l.b16 %v57
  %v140 = vunpack.c.l.b16 %v58
  %v141 = vunpack.c.l.b16 %v59
  %v142 = vunpack.c.l.b16 %v60
  %v143 = vunpack.c.l.b16 %v61
  %v144 = vunpack.c.l.b16 %v62
  %v145 = vunpack.c.l.b16 %v63
  %v146 = vpack.c.b16 %v131, %v130
  %v147 = vpack.c.b16 %v133, %v132
  %v148 = vpack.c.b16 %v135, %v134
  %v149 = vpack.c.b16 %v137, %v136
  %v150 = vpack.c.b16 %v139, %v138
  %v151 = vpack.c.b16 %v141, %v140
  %v152 = vpack.c.b16 %v143, %v142
  %v153 = vpack.c.b16 %v145, %v144
  %162 = vmatprep.subr.bf16.mxu0 0
  %163 = vmatpush1.bf16.msra.mxu0 %v146
  %164 = vmatprep.subr.bf16.mxu0 0
  %165 = vmatpush1.bf16.msra.mxu0 %v147
  %166 = vmatprep.subr.bf16.mxu0 0
  %167 = vmatpush1.bf16.msra.mxu0 %v148
  %168 = vmatprep.subr.bf16.mxu0 0
  %169 = vmatpush1.bf16.msra.mxu0 %v149
  %170 = vmatprep.subr.bf16.mxu0 0
  %171 = vmatpush1.bf16.msra.mxu0 %v150
  %172 = vmatprep.subr.bf16.mxu0 0
  %173 = vmatpush1.bf16.msra.mxu0 %v151
  %174 = vmatprep.subr.bf16.mxu0 0
  %175 = vmatpush1.bf16.msra.mxu0 %v152
  %176 = vmatprep.subr.bf16.mxu0 0
  %177 = vmatpush1.bf16.msra.mxu0 %v153
  %178 = vmatprep.subr.bf16.mxu0 0
  %179 = vmatpush1.bf16.msra.mxu0 0
  %180 = vmatprep.subr.bf16.mxu0 0
  %181 = vmatpush1.bf16.msra.mxu0 0
  %182 = vmatprep.subr.bf16.mxu0 0
  %183 = vmatpush1.bf16.msra.mxu0 0
  %184 = vmatprep.subr.bf16.mxu0 0
  %185 = vmatpush1.bf16.msra.mxu0 0
  %186 = vmatprep.subr.bf16.mxu0 0
  %187 = vmatpush1.bf16.msra.mxu0 0
  %188 = vmatprep.subr.bf16.mxu0 0
  %189 = vmatpush1.bf16.msra.mxu0 0
  %190 = vmatprep.subr.bf16.mxu0 0
  %191 = vmatpush1.bf16.msra.mxu0 0
  %192 = vmatprep.subr.bf16.mxu0 0
  %193 = vmatpush1.bf16.msra.mxu0 0
  %194 = vmatprep.mubr.bf16.mxu0 0
  %195 = vmatmul.mubr.bf16.gmra.mrb[0].mxu0 %v98
  %v196 = vpop.f32.mrb[0].mxu0
  %v197 = vadd.f32 0.0, %v196
  %v198 = vpop.f32.mrb[0].mxu0
  %v199 = vpop.f32.mrb[0].mxu0
  %v200 = vadd.f32 0.0, %v199
  %v201 = vpop.f32.mrb[0].mxu0
  %202 = vmatprep.mubr.bf16.mxu0 0
  %203 = vmatmul.mubr.bf16.gmra.mrb[0].mxu0 %v99
  %v204 = vpop.f32.mrb[0].mxu0
  %v205 = vadd.f32 0.0, %v204
  %v206 = vpop.f32.mrb[0].mxu0
  %v207 = vpop.f32.mrb[0].mxu0
  %v208 = vadd.f32 0.0, %v207
  %v209 = vpop.f32.mrb[0].mxu0
  %210 = vmatprep.mubr.bf16.mxu0 0
  %211 = vmatmul.mubr.bf16.gmra.mrb[0].mxu0 %v100
  %v212 = vpop.f32.mrb[0].mxu0
  %v213 = vadd.f32 0.0, %v212
  %v214 = vpop.f32.mrb[0].mxu0
  %v215 = vpop.f32.mrb[0].mxu0
  %v216 = vadd.f32 0.0, %v215
  %v217 = vpop.f32.mrb[0].mxu0
  %218 = vmatprep.mubr.bf16.mxu0 0
  %219 = vmatmul.mubr.bf16.gmra.mrb[0].mxu0 %v101
  %v220 = vpop.f32.mrb[0].mxu0
  %v221 = vadd.f32 0.0, %v220
  %v222 = vpop.f32.mrb[0].mxu0
  %v223 = vpop.f32.mrb[0].mxu0
  %v224 = vadd.f32 0.0, %v223
  %v225 = vpop.f32.mrb[0].mxu0
  %226 = vmatprep.mubr.bf16.mxu0 0
  %227 = vmatmul.mubr.bf16.gmra.mrb[0].mxu0 %v102
  %v228 = vpop.f32.mrb[0].mxu0
  %v229 = vadd.f32 0.0, %v228
  %v230 = vpop.f32.mrb[0].mxu0
  %v231 = vpop.f32.mrb[0].mxu0
  %v232 = vadd.f32 0.0, %v231
  %v233 = vpop.f32.mrb[0].mxu0
  %234 = vmatprep.mubr.bf16.mxu0 0
  %235 = vmatmul.mubr.bf16.gmra.mrb[0].mxu0 %v103
  %v236 = vpop.f32.mrb[0].mxu0
  %v237 = vadd.f32 0.0, %v236
  %v238 = vpop.f32.mrb[0].mxu0
  %v239 = vpop.f32.mrb[0].mxu0
  %v240 = vadd.f32 0.0, %v239
  %v241 = vpop.f32.mrb[0].mxu0
  %242 = vmatprep.mubr.bf16.mxu0 0
  %243 = vmatmul.mubr.bf16.gmra.mrb[0].mxu0 %v104
  %v244 = vpop.f32.mrb[0].mxu0
  %v245 = vadd.f32 0.0, %v244
  %v246 = vpop.f32.mrb[0].mxu0
  %v247 = vpop.f32.mrb[0].mxu0
  %v248 = vadd.f32 0.0, %v247
  %v249 = vpop.f32.mrb[0].mxu0
  %250 = vmatprep.mubr.bf16.mxu0 0
  %251 = vmatmul.mubr.bf16.gmra.mrb[0].mxu0 %v105
  %v252 = vpop.f32.mrb[0].mxu0
  %v253 = vadd.f32 0.0, %v252
  %v254 = vpop.f32.mrb[0].mxu0
  %v255 = vpop.f32.mrb[0].mxu0
  %v256 = vadd.f32 0.0, %v255
  %v257 = vpop.f32.mrb[0].mxu0
  %258 = vdwg.mxu0
  %v259 = vpack.c.bf16 %v200, %v197
  %v260 = vpack.c.bf16 %v208, %v205
  %v261 = vpack.c.bf16 %v216, %v213
  %v262 = vpack.c.bf16 %v224, %v221
  %v263 = vpack.c.bf16 %v232, %v229
  %v264 = vpack.c.bf16 %v240, %v237
  %v265 = vpack.c.bf16 %v248, %v245
  %v266 = vpack.c.bf16 %v256, %v253
  %v267 = vpack.c.bf16 %v64, %v64
  %v269 = vlaneseq
  %v270 = vshrl.u32 %v269, 7
  %v271 = vsub.s32 0, %v270
  %v272 = vrot.slane %v65, %v271
  %vm274 = vcmask 31744
  %v276 = vsel %vm274, %v259, 0
  %v279 = vsel %vm274, %v260, 0
  %v282 = vsel %vm274, %v261, 0
  %v285 = vsel %vm274, %v262, 0
  %v288 = vsel %vm274, %v263, 0
  %v291 = vsel %vm274, %v264, 0
  %v294 = vsel %vm274, %v265, 0
  %v297 = vsel %vm274, %v266, 0
  %vm299 = vcmask 1041408
  %v301 = vsel %vm299, %v267, 0
  %303 = vmatprep.subr.bf16.mxu0 0
  %304 = vmatpush1.bf16.msra.mxu0 %v301
  %305 = vmatprep.subr.bf16.mxu0 0
  %306 = vmatpush1.bf16.msra.mxu0 0
  %307 = vmatprep.subr.bf16.mxu0 0
  %308 = vmatpush1.bf16.msra.mxu0 0
  %309 = vmatprep.subr.bf16.mxu0 0
  %310 = vmatpush1.bf16.msra.mxu0 0
  %311 = vmatprep.subr.bf16.mxu0 0
  %312 = vmatpush1.bf16.msra.mxu0 0
  %313 = vmatprep.subr.bf16.mxu0 0
  %314 = vmatpush1.bf16.msra.mxu0 0
  %315 = vmatprep.subr.bf16.mxu0 0
  %316 = vmatpush1.bf16.msra.mxu0 0
  %317 = vmatprep.subr.bf16.mxu0 0
  %318 = vmatpush1.bf16.msra.mxu0 0
  %319 = vmatprep.subr.bf16.mxu0 0
  %320 = vmatpush1.bf16.msra.mxu0 0
  %321 = vmatprep.subr.bf16.mxu0 0
  %322 = vmatpush1.bf16.msra.mxu0 0
  %323 = vmatprep.subr.bf16.mxu0 0
  %324 = vmatpush1.bf16.msra.mxu0 0
  %325 = vmatprep.subr.bf16.mxu0 0
  %326 = vmatpush1.bf16.msra.mxu0 0
  %327 = vmatprep.subr.bf16.mxu0 0
  %328 = vmatpush1.bf16.msra.mxu0 0
  %329 = vmatprep.subr.bf16.mxu0 0
  %330 = vmatpush1.bf16.msra.mxu0 0
  %331 = vmatprep.subr.bf16.mxu0 0
  %332 = vmatpush1.bf16.msra.mxu0 0
  %333 = vmatprep.subr.bf16.mxu0 0
  %334 = vmatpush1.bf16.msra.mxu0 0
  %335 = vmatprep.mubr.bf16.mxu0 0
  %336 = vmatmul.mubr.bf16.gmra.mrb[0].mxu0 %v276
  %v337 = vpop.f32.mrb[0].mxu0
  %v338 = vadd.f32 %v272, %v337
  %v339 = vpop.f32.mrb[0].mxu0
  %v340 = vpop.f32.mrb[0].mxu0
  %v341 = vadd.f32 %v272, %v340
  %v342 = vpop.f32.mrb[0].mxu0
  %343 = vmatprep.mubr.bf16.mxu0 0
  %344 = vmatmul.mubr.bf16.gmra.mrb[0].mxu0 %v279
  %v345 = vpop.f32.mrb[0].mxu0
  %v346 = vadd.f32 %v272, %v345
  %v347 = vpop.f32.mrb[0].mxu0
  %v348 = vpop.f32.mrb[0].mxu0
  %v349 = vadd.f32 %v272, %v348
  %v350 = vpop.f32.mrb[0].mxu0
  %351 = vmatprep.mubr.bf16.mxu0 0
  %352 = vmatmul.mubr.bf16.gmra.mrb[0].mxu0 %v282
  %v353 = vpop.f32.mrb[0].mxu0
  %v354 = vadd.f32 %v272, %v353
  %v355 = vpop.f32.mrb[0].mxu0
  %v356 = vpop.f32.mrb[0].mxu0
  %v357 = vadd.f32 %v272, %v356
  %v358 = vpop.f32.mrb[0].mxu0
  %359 = vmatprep.mubr.bf16.mxu0 0
  %360 = vmatmul.mubr.bf16.gmra.mrb[0].mxu0 %v285
  %v361 = vpop.f32.mrb[0].mxu0
  %v362 = vadd.f32 %v272, %v361
  %v363 = vpop.f32.mrb[0].mxu0
  %v364 = vpop.f32.mrb[0].mxu0
  %v365 = vadd.f32 %v272, %v364
  %v366 = vpop.f32.mrb[0].mxu0
  %367 = vmatprep.mubr.bf16.mxu0 0
  %368 = vmatmul.mubr.bf16.gmra.mrb[0].mxu0 %v288
  %v369 = vpop.f32.mrb[0].mxu0
  %v370 = vadd.f32 %v272, %v369
  %v371 = vpop.f32.mrb[0].mxu0
  %v372 = vpop.f32.mrb[0].mxu0
  %v373 = vadd.f32 %v272, %v372
  %v374 = vpop.f32.mrb[0].mxu0
  %375 = vmatprep.mubr.bf16.mxu0 0
  %376 = vmatmul.mubr.bf16.gmra.mrb[0].mxu0 %v291
  %v377 = vpop.f32.mrb[0].mxu0
  %v378 = vadd.f32 %v272, %v377
  %v379 = vpop.f32.mrb[0].mxu0
  %v380 = vpop.f32.mrb[0].mxu0
  %v381 = vadd.f32 %v272, %v380
  %v382 = vpop.f32.mrb[0].mxu0
  %383 = vmatprep.mubr.bf16.mxu0 0
  %384 = vmatmul.mubr.bf16.gmra.mrb[0].mxu0 %v294
  %v385 = vpop.f32.mrb[0].mxu0
  %v386 = vadd.f32 %v272, %v385
  %v387 = vpop.f32.mrb[0].mxu0
  %v388 = vpop.f32.mrb[0].mxu0
  %v389 = vadd.f32 %v272, %v388
  %v390 = vpop.f32.mrb[0].mxu0
  %391 = vmatprep.mubr.bf16.mxu0 0
  %392 = vmatmul.mubr.bf16.gmra.mrb[0].mxu0 %v297
  %v393 = vpop.f32.mrb[0].mxu0
  %v394 = vadd.f32 %v272, %v393
  %v395 = vpop.f32.mrb[0].mxu0
  %v396 = vpop.f32.mrb[0].mxu0
  %v397 = vadd.f32 %v272, %v396
  %v398 = vpop.f32.mrb[0].mxu0
  %399 = vdwg.mxu0
  %v400 = vmax.f32 %v338, 0.0
  %v401 = vmax.f32 %v341, 0.0
  %v402 = vmax.f32 %v346, 0.0
  %v403 = vmax.f32 %v349, 0.0
  %v404 = vmax.f32 %v354, 0.0
  %v405 = vmax.f32 %v357, 0.0
  %v406 = vmax.f32 %v362, 0.0
  %v407 = vmax.f32 %v365, 0.0
  %v408 = vmax.f32 %v370, 0.0
  %v409 = vmax.f32 %v373, 0.0
  %v410 = vmax.f32 %v378, 0.0
  %v411 = vmax.f32 %v381, 0.0
  %v412 = vmax.f32 %v386, 0.0
  %v413 = vmax.f32 %v389, 0.0
  %v414 = vmax.f32 %v394, 0.0
  %v415 = vmax.f32 %v397, 0.0
  %v416 = vld [vmem:[%s4] sm:$0xff]
  %v417 = vld [vmem:[%s4 + $0x8] sm:$0xff]
  %v418 = vld [vmem:[%s4 + $0x10] sm:$0xff]
  %v419 = vld [vmem:[%s4 + $0x18] sm:$0xff]
  %v420 = vld [vmem:[%s5] sm:$0x1]
  %v421 = vpack.c.bf16 %v401, %v400
  %v422 = vpack.c.bf16 %v403, %v402
  %v423 = vpack.c.bf16 %v405, %v404
  %v424 = vpack.c.bf16 %v407, %v406
  %v425 = vpack.c.bf16 %v409, %v408
  %v426 = vpack.c.bf16 %v411, %v410
  %v427 = vpack.c.bf16 %v413, %v412
  %v428 = vpack.c.bf16 %v415, %v414
  %v429 = vpack.c.bf16 %v417, %v416
  %v430 = vpack.c.bf16 %v419, %v418
  %vm431 = vcmask 261120
  %v433 = vsel %vm431, %v421, 0
  %v436 = vsel %vm431, %v422, 0
  %v439 = vsel %vm431, %v423, 0
  %v442 = vsel %vm431, %v424, 0
  %v445 = vsel %vm431, %v425, 0
  %v448 = vsel %vm431, %v426, 0
  %v451 = vsel %vm431, %v427, 0
  %v454 = vsel %vm431, %v428, 0
  %456 = vmatprep.subr.bf16.mxu0 0
  %457 = vmatpush1.bf16.msra.mxu0 %v429
  %458 = vmatprep.subr.bf16.mxu0 0
  %459 = vmatpush1.bf16.msra.mxu0 %v430
  %460 = vmatprep.subr.bf16.mxu0 0
  %461 = vmatpush1.bf16.msra.mxu0 0
  %462 = vmatprep.subr.bf16.mxu0 0
  %463 = vmatpush1.bf16.msra.mxu0 0
  %464 = vmatprep.subr.bf16.mxu0 0
  %465 = vmatpush1.bf16.msra.mxu0 0
  %466 = vmatprep.subr.bf16.mxu0 0
  %467 = vmatpush1.bf16.msra.mxu0 0
  %468 = vmatprep.subr.bf16.mxu0 0
  %469 = vmatpush1.bf16.msra.mxu0 0
  %470 = vmatprep.subr.bf16.mxu0 0
  %471 = vmatpush1.bf16.msra.mxu0 0
  %472 = vmatprep.subr.bf16.mxu0 0
  %473 = vmatpush1.bf16.msra.mxu0 0
  %474 = vmatprep.subr.bf16.mxu0 0
  %475 = vmatpush1.bf16.msra.mxu0 0
  %476 = vmatprep.subr.bf16.mxu0 0
  %477 = vmatpush1.bf16.msra.mxu0 0
  %478 = vmatprep.subr.bf16.mxu0 0
  %479 = vmatpush1.bf16.msra.mxu0 0
  %480 = vmatprep.subr.bf16.mxu0 0
  %481 = vmatpush1.bf16.msra.mxu0 0
  %482 = vmatprep.subr.bf16.mxu0 0
  %483 = vmatpush1.bf16.msra.mxu0 0
  %484 = vmatprep.subr.bf16.mxu0 0
  %485 = vmatpush1.bf16.msra.mxu0 0
  %486 = vmatprep.subr.bf16.mxu0 0
  %487 = vmatpush1.bf16.msra.mxu0 0
  %488 = vmatprep.mubr.bf16.mxu0 0
  %489 = vmatmul.mubr.bf16.gmra.mrb[0].mxu0 %v433
  %v490 = vpop.f32.mrb[0].mxu0
  %v491 = vadd.f32 0.0, %v490
  %v492 = vpop.f32.mrb[0].mxu0
  %v493 = vpop.f32.mrb[0].mxu0
  %v494 = vadd.f32 0.0, %v493
  %v495 = vpop.f32.mrb[0].mxu0
  %496 = vmatprep.mubr.bf16.mxu0 0
  %497 = vmatmul.mubr.bf16.gmra.mrb[0].mxu0 %v436
  %v498 = vpop.f32.mrb[0].mxu0
  %v499 = vadd.f32 0.0, %v498
  %v500 = vpop.f32.mrb[0].mxu0
  %v501 = vpop.f32.mrb[0].mxu0
  %v502 = vadd.f32 0.0, %v501
  %v503 = vpop.f32.mrb[0].mxu0
  %504 = vmatprep.mubr.bf16.mxu0 0
  %505 = vmatmul.mubr.bf16.gmra.mrb[0].mxu0 %v439
  %v506 = vpop.f32.mrb[0].mxu0
  %v507 = vadd.f32 0.0, %v506
  %v508 = vpop.f32.mrb[0].mxu0
  %v509 = vpop.f32.mrb[0].mxu0
  %v510 = vadd.f32 0.0, %v509
  %v511 = vpop.f32.mrb[0].mxu0
  %512 = vmatprep.mubr.bf16.mxu0 0
  %513 = vmatmul.mubr.bf16.gmra.mrb[0].mxu0 %v442
  %v514 = vpop.f32.mrb[0].mxu0
  %v515 = vadd.f32 0.0, %v514
  %v516 = vpop.f32.mrb[0].mxu0
  %v517 = vpop.f32.mrb[0].mxu0
  %v518 = vadd.f32 0.0, %v517
  %v519 = vpop.f32.mrb[0].mxu0
  %520 = vmatprep.mubr.bf16.mxu0 0
  %521 = vmatmul.mubr.bf16.gmra.mrb[0].mxu0 %v445
  %v522 = vpop.f32.mrb[0].mxu0
  %v523 = vadd.f32 0.0, %v522
  %v524 = vpop.f32.mrb[0].mxu0
  %v525 = vpop.f32.mrb[0].mxu0
  %v526 = vadd.f32 0.0, %v525
  %v527 = vpop.f32.mrb[0].mxu0
  %528 = vmatprep.mubr.bf16.mxu0 0
  %529 = vmatmul.mubr.bf16.gmra.mrb[0].mxu0 %v448
  %v530 = vpop.f32.mrb[0].mxu0
  %v531 = vadd.f32 0.0, %v530
  %v532 = vpop.f32.mrb[0].mxu0
  %v533 = vpop.f32.mrb[0].mxu0
  %v534 = vadd.f32 0.0, %v533
  %v535 = vpop.f32.mrb[0].mxu0
  %536 = vmatprep.mubr.bf16.mxu0 0
  %537 = vmatmul.mubr.bf16.gmra.mrb[0].mxu0 %v451
  %v538 = vpop.f32.mrb[0].mxu0
  %v539 = vadd.f32 0.0, %v538
  %v540 = vpop.f32.mrb[0].mxu0
  %v541 = vpop.f32.mrb[0].mxu0
  %v542 = vadd.f32 0.0, %v541
  %v543 = vpop.f32.mrb[0].mxu0
  %544 = vmatprep.mubr.bf16.mxu0 0
  %545 = vmatmul.mubr.bf16.gmra.mrb[0].mxu0 %v454
  %v546 = vpop.f32.mrb[0].mxu0
  %v547 = vadd.f32 0.0, %v546
  %v548 = vpop.f32.mrb[0].mxu0
  %v549 = vpop.f32.mrb[0].mxu0
  %v550 = vadd.f32 0.0, %v549
  %v551 = vpop.f32.mrb[0].mxu0
  %552 = vdwg.mxu0
  %v553 = vpack.c.bf16 %v494, %v491
  %v554 = vpack.c.bf16 %v502, %v499
  %v555 = vpack.c.bf16 %v510, %v507
  %v556 = vpack.c.bf16 %v518, %v515
  %v557 = vpack.c.bf16 %v526, %v523
  %v558 = vpack.c.bf16 %v534, %v531
  %v559 = vpack.c.bf16 %v542, %v539
  %v560 = vpack.c.bf16 %v550, %v547
  %v562 = vlaneseq
  %v563 = vshrl.u32 %v562, 7
  %v564 = vsub.s32 0, %v563
  %v565 = vrot.slane %v420, %v564
  %567 = vmatprep.subr.bf16.mxu0 0
  %568 = vmatpush1.bf16.msra.mxu0 %v553
  %569 = vmatprep.subr.bf16.mxu0 0
  %570 = vmatpush1.bf16.msra.mxu0 %v554
  %571 = vmatprep.subr.bf16.mxu0 0
  %572 = vmatpush1.bf16.msra.mxu0 %v555
  %573 = vmatprep.subr.bf16.mxu0 0
  %574 = vmatpush1.bf16.msra.mxu0 %v556
  %575 = vmatprep.subr.bf16.mxu0 0
  %576 = vmatpush1.bf16.msra.mxu0 %v557
  %577 = vmatprep.subr.bf16.mxu0 0
  %578 = vmatpush1.bf16.msra.mxu0 %v558
  %579 = vmatprep.subr.bf16.mxu0 0
  %580 = vmatpush1.bf16.msra.mxu0 %v559
  %581 = vmatprep.subr.bf16.mxu0 0
  %582 = vmatpush1.bf16.msra.mxu0 %v560
  %583 = vmatprep.subr.bf16.mxu0 0
  %584 = vmatpush1.bf16.msra.mxu0 0
  %585 = vmatprep.subr.bf16.mxu0 0
  %586 = vmatpush1.bf16.msra.mxu0 0
  %587 = vmatprep.subr.bf16.mxu0 0
  %588 = vmatpush1.bf16.msra.mxu0 0
  %589 = vmatprep.subr.bf16.mxu0 0
  %590 = vmatpush1.bf16.msra.mxu0 0
  %591 = vmatprep.subr.bf16.mxu0 0
  %592 = vmatpush1.bf16.msra.mxu0 0
  %593 = vmatprep.subr.bf16.mxu0 0
  %594 = vmatpush1.bf16.msra.mxu0 0
  %595 = vmatprep.subr.bf16.mxu0 0
  %596 = vmatpush1.bf16.msra.mxu0 0
  %597 = vmatprep.subr.bf16.mxu0 0
  %598 = vmatpush1.bf16.msra.mxu0 0
  %599 = vmatprep.mubr.bf16.mxu0 0
  %600 = vmatmul.mubr.bf16.gmra.mrb[0].mxu0 %v98
  %v601 = vpop.f32.mrb[0].mxu0
  %v602 = vadd.f32 %v565, %v601
  %v603 = vpop.f32.mrb[0].mxu0
  %v604 = vpop.f32.mrb[0].mxu0
  %v605 = vadd.f32 %v565, %v604
  %v606 = vpop.f32.mrb[0].mxu0
  %607 = vmatprep.mubr.bf16.mxu0 0
  %608 = vmatmul.mubr.bf16.gmra.mrb[0].mxu0 %v99
  %v609 = vpop.f32.mrb[0].mxu0
  %v610 = vadd.f32 %v565, %v609
  %v611 = vpop.f32.mrb[0].mxu0
  %v612 = vpop.f32.mrb[0].mxu0
  %v613 = vadd.f32 %v565, %v612
  %v614 = vpop.f32.mrb[0].mxu0
  %615 = vmatprep.mubr.bf16.mxu0 0
  %616 = vmatmul.mubr.bf16.gmra.mrb[0].mxu0 %v100
  %v617 = vpop.f32.mrb[0].mxu0
  %v618 = vadd.f32 %v565, %v617
  %v619 = vpop.f32.mrb[0].mxu0
  %v620 = vpop.f32.mrb[0].mxu0
  %v621 = vadd.f32 %v565, %v620
  %v622 = vpop.f32.mrb[0].mxu0
  %623 = vmatprep.mubr.bf16.mxu0 0
  %624 = vmatmul.mubr.bf16.gmra.mrb[0].mxu0 %v101
  %v625 = vpop.f32.mrb[0].mxu0
  %v626 = vadd.f32 %v565, %v625
  %v627 = vpop.f32.mrb[0].mxu0
  %v628 = vpop.f32.mrb[0].mxu0
  %v629 = vadd.f32 %v565, %v628
  %v630 = vpop.f32.mrb[0].mxu0
  %631 = vmatprep.mubr.bf16.mxu0 0
  %632 = vmatmul.mubr.bf16.gmra.mrb[0].mxu0 %v102
  %v633 = vpop.f32.mrb[0].mxu0
  %v634 = vadd.f32 %v565, %v633
  %v635 = vpop.f32.mrb[0].mxu0
  %v636 = vpop.f32.mrb[0].mxu0
  %v637 = vadd.f32 %v565, %v636
  %v638 = vpop.f32.mrb[0].mxu0
  %639 = vmatprep.mubr.bf16.mxu0 0
  %640 = vmatmul.mubr.bf16.gmra.mrb[0].mxu0 %v103
  %v641 = vpop.f32.mrb[0].mxu0
  %v642 = vadd.f32 %v565, %v641
  %v643 = vpop.f32.mrb[0].mxu0
  %v644 = vpop.f32.mrb[0].mxu0
  %v645 = vadd.f32 %v565, %v644
  %v646 = vpop.f32.mrb[0].mxu0
  %647 = vmatprep.mubr.bf16.mxu0 0
  %648 = vmatmul.mubr.bf16.gmra.mrb[0].mxu0 %v104
  %v649 = vpop.f32.mrb[0].mxu0
  %v650 = vadd.f32 %v565, %v649
  %v651 = vpop.f32.mrb[0].mxu0
  %v652 = vpop.f32.mrb[0].mxu0
  %v653 = vadd.f32 %v565, %v652
  %v654 = vpop.f32.mrb[0].mxu0
  %655 = vmatprep.mubr.bf16.mxu0 0
  %656 = vmatmul.mubr.bf16.gmra.mrb[0].mxu0 %v105
  %v657 = vpop.f32.mrb[0].mxu0
  %v658 = vadd.f32 %v565, %v657
  %v659 = vpop.f32.mrb[0].mxu0
  %v660 = vpop.f32.mrb[0].mxu0
  %v661 = vadd.f32 %v565, %v660
  %v662 = vpop.f32.mrb[0].mxu0
  %663 = vdwg.mxu0
  %v664 = vmax.f32 %v602, 0.0
  %v665 = vmax.f32 %v605, 0.0
  %v666 = vmax.f32 %v610, 0.0
  %v667 = vmax.f32 %v613, 0.0
  %v668 = vmax.f32 %v618, 0.0
  %v669 = vmax.f32 %v621, 0.0
  %v670 = vmax.f32 %v626, 0.0
  %v671 = vmax.f32 %v629, 0.0
  %v672 = vmax.f32 %v634, 0.0
  %v673 = vmax.f32 %v637, 0.0
  %v674 = vmax.f32 %v642, 0.0
  %v675 = vmax.f32 %v645, 0.0
  %v676 = vmax.f32 %v650, 0.0
  %v677 = vmax.f32 %v653, 0.0
  %v678 = vmax.f32 %v658, 0.0
  %v679 = vmax.f32 %v661, 0.0
  %v680 = vld [vmem:[%s6] sm:$0xff]
  %v681 = vld [vmem:[%s6 + $0x8] sm:$0xff]
  %v682 = vld [vmem:[%s7] sm:$0x1]
  %v683 = vpack.c.bf16 %v665, %v664
  %v684 = vpack.c.bf16 %v667, %v666
  %v685 = vpack.c.bf16 %v669, %v668
  %v686 = vpack.c.bf16 %v671, %v670
  %v687 = vpack.c.bf16 %v673, %v672
  %v688 = vpack.c.bf16 %v675, %v674
  %v689 = vpack.c.bf16 %v677, %v676
  %v690 = vpack.c.bf16 %v679, %v678
  %v691 = vpack.c.bf16 %v681, %v680
  %vm692 = vcmask 130048
  %v694 = vsel %vm692, %v683, 0
  %v697 = vsel %vm692, %v684, 0
  %v700 = vsel %vm692, %v685, 0
  %v703 = vsel %vm692, %v686, 0
  %v706 = vsel %vm692, %v687, 0
  %v709 = vsel %vm692, %v688, 0
  %v712 = vsel %vm692, %v689, 0
  %v715 = vsel %vm692, %v690, 0
  %717 = vmatprep.subr.bf16.mxu0 0
  %718 = vmatpush1.bf16.msra.mxu0 %v691
  %719 = vmatprep.subr.bf16.mxu0 0
  %720 = vmatpush1.bf16.msra.mxu0 0
  %721 = vmatprep.subr.bf16.mxu0 0
  %722 = vmatpush1.bf16.msra.mxu0 0
  %723 = vmatprep.subr.bf16.mxu0 0
  %724 = vmatpush1.bf16.msra.mxu0 0
  %725 = vmatprep.subr.bf16.mxu0 0
  %726 = vmatpush1.bf16.msra.mxu0 0
  %727 = vmatprep.subr.bf16.mxu0 0
  %728 = vmatpush1.bf16.msra.mxu0 0
  %729 = vmatprep.subr.bf16.mxu0 0
  %730 = vmatpush1.bf16.msra.mxu0 0
  %731 = vmatprep.subr.bf16.mxu0 0
  %732 = vmatpush1.bf16.msra.mxu0 0
  %733 = vmatprep.subr.bf16.mxu0 0
  %734 = vmatpush1.bf16.msra.mxu0 0
  %735 = vmatprep.subr.bf16.mxu0 0
  %736 = vmatpush1.bf16.msra.mxu0 0
  %737 = vmatprep.subr.bf16.mxu0 0
  %738 = vmatpush1.bf16.msra.mxu0 0
  %739 = vmatprep.subr.bf16.mxu0 0
  %740 = vmatpush1.bf16.msra.mxu0 0
  %741 = vmatprep.subr.bf16.mxu0 0
  %742 = vmatpush1.bf16.msra.mxu0 0
  %743 = vmatprep.subr.bf16.mxu0 0
  %744 = vmatpush1.bf16.msra.mxu0 0
  %745 = vmatprep.subr.bf16.mxu0 0
  %746 = vmatpush1.bf16.msra.mxu0 0
  %747 = vmatprep.subr.bf16.mxu0 0
  %748 = vmatpush1.bf16.msra.mxu0 0
  %749 = vmatprep.mubr.bf16.mxu0 0
  %750 = vmatmul.mubr.bf16.gmra.mrb[0].mxu0 %v694
  %v751 = vpop.f32.mrb[0].mxu0
  %v752 = vadd.f32 0.0, %v751
  %v753 = vpop.f32.mrb[0].mxu0
  %v754 = vpop.f32.mrb[0].mxu0
  %v755 = vadd.f32 0.0, %v754
  %v756 = vpop.f32.mrb[0].mxu0
  %757 = vmatprep.mubr.bf16.mxu0 0
  %758 = vmatmul.mubr.bf16.gmra.mrb[0].mxu0 %v697
  %v759 = vpop.f32.mrb[0].mxu0
  %v760 = vadd.f32 0.0, %v759
  %v761 = vpop.f32.mrb[0].mxu0
  %v762 = vpop.f32.mrb[0].mxu0
  %v763 = vadd.f32 0.0, %v762
  %v764 = vpop.f32.mrb[0].mxu0
  %765 = vmatprep.mubr.bf16.mxu0 0
  %766 = vmatmul.mubr.bf16.gmra.mrb[0].mxu0 %v700
  %v767 = vpop.f32.mrb[0].mxu0
  %v768 = vadd.f32 0.0, %v767
  %v769 = vpop.f32.mrb[0].mxu0
  %v770 = vpop.f32.mrb[0].mxu0
  %v771 = vadd.f32 0.0, %v770
  %v772 = vpop.f32.mrb[0].mxu0
  %773 = vmatprep.mubr.bf16.mxu0 0
  %774 = vmatmul.mubr.bf16.gmra.mrb[0].mxu0 %v703
  %v775 = vpop.f32.mrb[0].mxu0
  %v776 = vadd.f32 0.0, %v775
  %v777 = vpop.f32.mrb[0].mxu0
  %v778 = vpop.f32.mrb[0].mxu0
  %v779 = vadd.f32 0.0, %v778
  %v780 = vpop.f32.mrb[0].mxu0
  %781 = vmatprep.mubr.bf16.mxu0 0
  %782 = vmatmul.mubr.bf16.gmra.mrb[0].mxu0 %v706
  %v783 = vpop.f32.mrb[0].mxu0
  %v784 = vadd.f32 0.0, %v783
  %v785 = vpop.f32.mrb[0].mxu0
  %v786 = vpop.f32.mrb[0].mxu0
  %v787 = vadd.f32 0.0, %v786
  %v788 = vpop.f32.mrb[0].mxu0
  %789 = vmatprep.mubr.bf16.mxu0 0
  %790 = vmatmul.mubr.bf16.gmra.mrb[0].mxu0 %v709
  %v791 = vpop.f32.mrb[0].mxu0
  %v792 = vadd.f32 0.0, %v791
  %v793 = vpop.f32.mrb[0].mxu0
  %v794 = vpop.f32.mrb[0].mxu0
  %v795 = vadd.f32 0.0, %v794
  %v796 = vpop.f32.mrb[0].mxu0
  %797 = vmatprep.mubr.bf16.mxu0 0
  %798 = vmatmul.mubr.bf16.gmra.mrb[0].mxu0 %v712
  %v799 = vpop.f32.mrb[0].mxu0
  %v800 = vadd.f32 0.0, %v799
  %v801 = vpop.f32.mrb[0].mxu0
  %v802 = vpop.f32.mrb[0].mxu0
  %v803 = vadd.f32 0.0, %v802
  %v804 = vpop.f32.mrb[0].mxu0
  %805 = vmatprep.mubr.bf16.mxu0 0
  %806 = vmatmul.mubr.bf16.gmra.mrb[0].mxu0 %v715
  %v807 = vpop.f32.mrb[0].mxu0
  %v808 = vadd.f32 0.0, %v807
  %v809 = vpop.f32.mrb[0].mxu0
  %v810 = vpop.f32.mrb[0].mxu0
  %v811 = vadd.f32 0.0, %v810
  %v812 = vpop.f32.mrb[0].mxu0
  %813 = vdwg.mxu0
  %v814 = vpack.c.bf16 %v755, %v752
  %v815 = vpack.c.bf16 %v763, %v760
  %v816 = vpack.c.bf16 %v771, %v768
  %v817 = vpack.c.bf16 %v779, %v776
  %v818 = vpack.c.bf16 %v787, %v784
  %v819 = vpack.c.bf16 %v795, %v792
  %v820 = vpack.c.bf16 %v803, %v800
  %v821 = vpack.c.bf16 %v811, %v808
  %v823 = vlaneseq
  %v824 = vshrl.u32 %v823, 7
  %v825 = vsub.s32 0, %v824
  %v826 = vrot.slane %v682, %v825
  %828 = vmatprep.subr.bf16.mxu0 0
  %829 = vmatpush1.bf16.msra.mxu0 %v814
  %830 = vmatprep.subr.bf16.mxu0 0
  %831 = vmatpush1.bf16.msra.mxu0 %v815
  %832 = vmatprep.subr.bf16.mxu0 0
  %833 = vmatpush1.bf16.msra.mxu0 %v816
  %834 = vmatprep.subr.bf16.mxu0 0
  %835 = vmatpush1.bf16.msra.mxu0 %v817
  %836 = vmatprep.subr.bf16.mxu0 0
  %837 = vmatpush1.bf16.msra.mxu0 %v818
  %838 = vmatprep.subr.bf16.mxu0 0
  %839 = vmatpush1.bf16.msra.mxu0 %v819
  %840 = vmatprep.subr.bf16.mxu0 0
  %841 = vmatpush1.bf16.msra.mxu0 %v820
  %842 = vmatprep.subr.bf16.mxu0 0
  %843 = vmatpush1.bf16.msra.mxu0 %v821
  %844 = vmatprep.subr.bf16.mxu0 0
  %845 = vmatpush1.bf16.msra.mxu0 0
  %846 = vmatprep.subr.bf16.mxu0 0
  %847 = vmatpush1.bf16.msra.mxu0 0
  %848 = vmatprep.subr.bf16.mxu0 0
  %849 = vmatpush1.bf16.msra.mxu0 0
  %850 = vmatprep.subr.bf16.mxu0 0
  %851 = vmatpush1.bf16.msra.mxu0 0
  %852 = vmatprep.subr.bf16.mxu0 0
  %853 = vmatpush1.bf16.msra.mxu0 0
  %854 = vmatprep.subr.bf16.mxu0 0
  %855 = vmatpush1.bf16.msra.mxu0 0
  %856 = vmatprep.subr.bf16.mxu0 0
  %857 = vmatpush1.bf16.msra.mxu0 0
  %858 = vmatprep.subr.bf16.mxu0 0
  %859 = vmatpush1.bf16.msra.mxu0 0
  %860 = vmatprep.mubr.bf16.mxu0 0
  %861 = vmatmul.mubr.bf16.gmra.mrb[0].mxu0 %v98
  %v862 = vpop.f32.mrb[0].mxu0
  %v863 = vadd.f32 %v826, %v862
  %v864 = vpop.f32.mrb[0].mxu0
  %v865 = vpop.f32.mrb[0].mxu0
  %v866 = vadd.f32 %v826, %v865
  %v867 = vpop.f32.mrb[0].mxu0
  %868 = vmatprep.mubr.bf16.mxu0 0
  %869 = vmatmul.mubr.bf16.gmra.mrb[0].mxu0 %v99
  %v870 = vpop.f32.mrb[0].mxu0
  %v871 = vadd.f32 %v826, %v870
  %v872 = vpop.f32.mrb[0].mxu0
  %v873 = vpop.f32.mrb[0].mxu0
  %v874 = vadd.f32 %v826, %v873
  %v875 = vpop.f32.mrb[0].mxu0
  %876 = vmatprep.mubr.bf16.mxu0 0
  %877 = vmatmul.mubr.bf16.gmra.mrb[0].mxu0 %v100
  %v878 = vpop.f32.mrb[0].mxu0
  %v879 = vadd.f32 %v826, %v878
  %v880 = vpop.f32.mrb[0].mxu0
  %v881 = vpop.f32.mrb[0].mxu0
  %v882 = vadd.f32 %v826, %v881
  %v883 = vpop.f32.mrb[0].mxu0
  %884 = vmatprep.mubr.bf16.mxu0 0
  %885 = vmatmul.mubr.bf16.gmra.mrb[0].mxu0 %v101
  %v886 = vpop.f32.mrb[0].mxu0
  %v887 = vadd.f32 %v826, %v886
  %v888 = vpop.f32.mrb[0].mxu0
  %v889 = vpop.f32.mrb[0].mxu0
  %v890 = vadd.f32 %v826, %v889
  %v891 = vpop.f32.mrb[0].mxu0
  %892 = vmatprep.mubr.bf16.mxu0 0
  %893 = vmatmul.mubr.bf16.gmra.mrb[0].mxu0 %v102
  %v894 = vpop.f32.mrb[0].mxu0
  %v895 = vadd.f32 %v826, %v894
  %v896 = vpop.f32.mrb[0].mxu0
  %v897 = vpop.f32.mrb[0].mxu0
  %v898 = vadd.f32 %v826, %v897
  %v899 = vpop.f32.mrb[0].mxu0
  %900 = vmatprep.mubr.bf16.mxu0 0
  %901 = vmatmul.mubr.bf16.gmra.mrb[0].mxu0 %v103
  %v902 = vpop.f32.mrb[0].mxu0
  %v903 = vadd.f32 %v826, %v902
  %v904 = vpop.f32.mrb[0].mxu0
  %v905 = vpop.f32.mrb[0].mxu0
  %v906 = vadd.f32 %v826, %v905
  %v907 = vpop.f32.mrb[0].mxu0
  %908 = vmatprep.mubr.bf16.mxu0 0
  %909 = vmatmul.mubr.bf16.gmra.mrb[0].mxu0 %v104
  %v910 = vpop.f32.mrb[0].mxu0
  %v911 = vadd.f32 %v826, %v910
  %v912 = vpop.f32.mrb[0].mxu0
  %v913 = vpop.f32.mrb[0].mxu0
  %v914 = vadd.f32 %v826, %v913
  %v915 = vpop.f32.mrb[0].mxu0
  %916 = vmatprep.mubr.bf16.mxu0 0
  %917 = vmatmul.mubr.bf16.gmra.mrb[0].mxu0 %v105
  %v918 = vpop.f32.mrb[0].mxu0
  %v919 = vadd.f32 %v826, %v918
  %v920 = vpop.f32.mrb[0].mxu0
  %v921 = vpop.f32.mrb[0].mxu0
  %v922 = vadd.f32 %v826, %v921
  %v923 = vpop.f32.mrb[0].mxu0
  %924 = vdwg.mxu0
  %925 = vst.msk [vmem:[%s9] sm:$0xff] %vm692, %v664
  %926 = vst.msk [vmem:[%s9 + $0x8] sm:$0xff] %vm692, %v665
  %927 = vst.msk [vmem:[%s9 + $0x10] sm:$0xff] %vm692, %v666
  %928 = vst.msk [vmem:[%s9 + $0x18] sm:$0xff] %vm692, %v667
  %929 = vst.msk [vmem:[%s9 + $0x20] sm:$0xff] %vm692, %v668
  %930 = vst.msk [vmem:[%s9 + $0x28] sm:$0xff] %vm692, %v669
  %931 = vst.msk [vmem:[%s9 + $0x30] sm:$0xff] %vm692, %v670
  %932 = vst.msk [vmem:[%s9 + $0x38] sm:$0xff] %vm692, %v671
  %933 = vst.msk [vmem:[%s9 + $0x40] sm:$0xff] %vm692, %v672
  %934 = vst.msk [vmem:[%s9 + $0x48] sm:$0xff] %vm692, %v673
  %935 = vst.msk [vmem:[%s9 + $0x50] sm:$0xff] %vm692, %v674
  %936 = vst.msk [vmem:[%s9 + $0x58] sm:$0xff] %vm692, %v675
  %937 = vst.msk [vmem:[%s9 + $0x60] sm:$0xff] %vm692, %v676
  %938 = vst.msk [vmem:[%s9 + $0x68] sm:$0xff] %vm692, %v677
  %939 = vst.msk [vmem:[%s9 + $0x70] sm:$0xff] %vm692, %v678
  %940 = vst.msk [vmem:[%s9 + $0x78] sm:$0xff] %vm692, %v679
  %941 = vst.msk [vmem:[%s8] sm:$0xff] %vm274, %v863
  %942 = vst.msk [vmem:[%s8 + $0x8] sm:$0xff] %vm274, %v866
  %943 = vst.msk [vmem:[%s8 + $0x10] sm:$0xff] %vm274, %v871
  %944 = vst.msk [vmem:[%s8 + $0x18] sm:$0xff] %vm274, %v874
  %945 = vst.msk [vmem:[%s8 + $0x20] sm:$0xff] %vm274, %v879
  %946 = vst.msk [vmem:[%s8 + $0x28] sm:$0xff] %vm274, %v882
  %947 = vst.msk [vmem:[%s8 + $0x30] sm:$0xff] %vm274, %v887
  %948 = vst.msk [vmem:[%s8 + $0x38] sm:$0xff] %vm274, %v890
  %949 = vst.msk [vmem:[%s8 + $0x40] sm:$0xff] %vm274, %v895
  %950 = vst.msk [vmem:[%s8 + $0x48] sm:$0xff] %vm274, %v898
  %951 = vst.msk [vmem:[%s8 + $0x50] sm:$0xff] %vm274, %v903
  %952 = vst.msk [vmem:[%s8 + $0x58] sm:$0xff] %vm274, %v906
  %953 = vst.msk [vmem:[%s8 + $0x60] sm:$0xff] %vm274, %v911
  %954 = vst.msk [vmem:[%s8 + $0x68] sm:$0xff] %vm274, %v914
  %955 = vst.msk [vmem:[%s8 + $0x70] sm:$0xff] %vm274, %v919
  %956 = vst.msk [vmem:[%s8 + $0x78] sm:$0xff] %vm274, %v922
  // Predicated region
  $region34: #{tpu_custom_call.1} parent=0 // pred_check
    _
  $region35: #{tpu_custom_call.1} parent=0 // pred_check_branch
    %958 = sbr.rel (0) target = $region37
  $region36: #{tpu_custom_call.1} parent=0 // pred_region
    _
  $region37: #{tpu_custom_call.1} parent=0 // pred_fallthru
    _
  // Predicated region
  $region38: #{tpu_custom_call.1} parent=0 // pred_check
    _
  $region39: #{tpu_custom_call.1} parent=0 // pred_check_branch
    %960 = sbr.rel (0) target = $region41
  $region40: #{tpu_custom_call.1} parent=0 // pred_region
    _
  $region41: #{tpu_custom_call.1} parent=0 // pred_fallthru
    _
  // Predicated region
  $region42: #{tpu_custom_call.1} parent=0 // pred_check
    _
  $region43: #{tpu_custom_call.1} parent=0 // pred_check_branch
    %962 = sbr.rel (0) target = $region45
  $region44: #{tpu_custom_call.1} parent=0 // pred_region
    _
  $region45: #{tpu_custom_call.1} parent=0 // pred_fallthru
    _
  // Predicated region
  $region46: #{tpu_custom_call.1} parent=0 // pred_check
    _
  $region47: #{tpu_custom_call.1} parent=0 // pred_check_branch
    %964 = sbr.rel (0) target = $region49
  $region48: #{tpu_custom_call.1} parent=0 // pred_region
    _
  $region49: #{tpu_custom_call.1} parent=0 // pred_fallthru
    _

</llo_original>
